<compile_context>
chip_gen: v5e
topology: v5e:2x2
jax: 0.10.0
libtpu: 0.0.40
codegen_flags: <defaults>
</compile_context>

<pallas_src>
import functools

import jax
import jax.numpy as jnp
from jax.experimental import pallas as pl
from jax.experimental.pallas import tpu as pltpu

# AsymmetricLoss default config (canonical ASL implementation)
GAMMA_NEG = 4.0   # handled as an exact integer power below
GAMMA_POS = 1.0   # handled as an exact integer power below
CLIP = 0.05
EPS = 1e-8

# Total bytes for the double-buffered *input* tiles (both operands, both buffers).
# 16 MiB total -> ~8 MiB of useful DMA per grid step; fits under the 32 MiB scoped-VMEM
# limit we request on every generation (v5e/v6e: 128 MiB physical, v7x: 64 MiB/TC).
_DBLBUF_INPUT_BUDGET = 16 * 1024 * 1024
_VMEM_LIMIT_BYTES = 32 * 1024 * 1024
_MAX_BLOCK_ROWS = 16384


def _scaled_asl_kernel(sb_ref, s_ref, y_ref, out_ref, *,
                       n_rows, block_rows, blocks_per_core, needs_mask):
    # sb_ref : (2,) f32 in SMEM (scalar-prefetch)  -> [s, b]
    # s_ref  : (TM, G) similarity-map tile in VMEM (native dtype)
    # y_ref  : (TM, G) 0/1 multi-label targets tile in VMEM (native dtype)
    # out_ref: (1, 1, 1) f32 per-core output block, resident across the reduction axis
    c = pl.program_id(0)
    i = pl.program_id(1)

    s = sb_ref[0]
    b = sb_ref[1]

    x = s_ref[...].astype(jnp.float32)
    # Hard 0/1 labels are only used as a predicate: compare in their native dtype
    # (no full-tile f32 cast of the labels).
    is_pos = y_ref[...] > 0

    # scaled logits
    z = s * x + b

    # probabilities; asymmetric clip on the negative side, folded into one subtract
    sig = jax.nn.sigmoid(z)
    xs_neg = jnp.minimum((1.0 + CLIP) - sig, 1.0)

    # eps clamp only on the positive operand (xs_neg >= CLIP >> EPS by construction);
    # the select then gives both the BCE probability and pt in one go
    p = jnp.where(is_pos, jnp.maximum(sig, EPS), xs_neg)
    log_p = jnp.log(p)

    # asymmetric focusing weight: (1-pt)^1 for positives, (1-pt)^4 for negatives,
    # via exact integer powers (no data-dependent pow -> no extra EUP work)
    base = 1.0 - p
    base2 = base * base
    w = jnp.where(is_pos, base, base2 * base2)

    elem = log_p * w                              # per-element (un-negated) loss

    # mask padded rows (ragged last tile and/or the clamped duplicate block of the last core)
    if needs_mask:
        rows = jax.lax.broadcasted_iota(jnp.int32, elem.shape, 0)
        start = (c * blocks_per_core + i) * block_rows
        elem = jnp.where(start + rows < n_rows, elem, 0.0)

    @pl.when(i == 0)
    def _():
        out_ref[...] = jnp.zeros_like(out_ref)

    # lane reduce then sublane reduce -> (1, 1) partial, accumulate in f32
    block_sum = jnp.sum(jnp.sum(elem, axis=1, keepdims=True), axis=0, keepdims=True)
    out_ref[...] += block_sum[None]


def _choose_block_rows(n_cols, itemsize_sum):
    """Row-tile size from the VMEM budget (no artificial cap beyond a sanity bound)."""
    g_pad = ((n_cols + 127) // 128) * 128
    tm = _DBLBUF_INPUT_BUDGET // (2 * g_pad * max(1, itemsize_sum))   # 2 = double buffering
    tm = (tm // 32) * 32   # multiple of 32: valid sublane tiling even for bf16/int8 inputs
    return int(max(32, min(tm, _MAX_BLOCK_ROWS)))


def scaled_asl(S, cls_lb, *, s=1.0, b=0.0, norm_s=True, block_rows=None):
    """ScaledASL forward. S, cls_lb: (N, G) in their native dtypes. Returns scalar f32 loss."""
    assert S.shape == cls_lb.shape and S.ndim == 2
    N, G = S.shape
    sb = jnp.array([s, b], dtype=jnp.float32)

    if block_rows is None:
        block_rows = _choose_block_rows(G, S.dtype.itemsize + cls_lb.dtype.itemsize)
    tm = min(block_rows, N)          # block dim == full array dim is always legal
    total_blocks = pl.cdiv(N, tm)

    # Split the reduction over a leading "parallel" axis so both TensorCores are used on
    # v7x (no-op on 1-TC v5e/v6e).  Each core gets its own resident (1,1,1) partial.
    num_cores = 2 if total_blocks >= 2 else 1
    bpc = pl.cdiv(total_blocks, num_cores)
    clamp_blocks = num_cores * bpc > total_blocks   # odd block count: last core re-reads a block
    needs_mask = num_cores * bpc * tm != N

    kernel = functools.partial(
        _scaled_asl_kernel, n_rows=N, block_rows=tm,
        blocks_per_core=bpc, needs_mask=needs_mask)

    def in_map(c, i, sb_ref):
        blk = c * bpc + i
        if clamp_blocks:
            # duplicate block is fully masked to zero inside the kernel
            blk = jnp.minimum(blk, total_blocks - 1)
        return (blk, 0)

    grid_spec = pltpu.PrefetchScalarGridSpec(
        num_scalar_prefetch=1,                          # sb -> SMEM
        grid=(num_cores, bpc),
        in_specs=[
            pl.BlockSpec((tm, G), in_map),              # S tile
            pl.BlockSpec((tm, G), in_map),              # cls_lb tile
        ],
        out_specs=pl.BlockSpec((1, 1, 1), lambda c, i, sb_ref: (c, 0, 0)),
    )

    partials = pl.pallas_call(
        kernel,
        out_shape=jax.ShapeDtypeStruct((num_cores, 1, 1), jnp.float32),
        grid_spec=grid_spec,
        compiler_params=pltpu.CompilerParams(
            dimension_semantics=("parallel", "arbitrary"),
            vmem_limit_bytes=_VMEM_LIMIT_BYTES),
    )(sb, S, cls_lb)

    loss = -jnp.sum(partials)
    if norm_s:
        loss = loss / jnp.float32(s)   # s is detached in torch -> same forward value
    return loss


def _scaled_asl_ref(S, cls_lb, *, s=1.0, b=0.0, norm_s=True):
    """Pure-JAX reference mirroring the PyTorch ScaledASL + AsymmetricLoss forward."""
    z = s * S + b
    x_sig = jax.nn.sigmoid(z)
    xs_pos = x_sig
    xs_neg = jnp.minimum(1.0 - x_sig + CLIP, 1.0)
    y = cls_lb
    los = y * jnp.log(jnp.maximum(xs_pos, EPS)) + (1.0 - y) * jnp.log(jnp.maximum(xs_neg, EPS))
    pt = xs_pos * y + xs_neg * (1.0 - y)
    w = jnp.power(1.0 - pt, GAMMA_POS * y + GAMMA_NEG * (1.0 - y))
    loss = -jnp.sum(los * w)
    return loss / s if norm_s else loss


if __name__ == "__main__":
    key = jax.random.PRNGKey(0)
    k1, k2, k3, k4, k5, k6 = jax.random.split(key, 6)

    s_param, b_param = 1.5, -0.25   # module __init__ defaults would be s=1.0, b=0.0

    # Case 1: small (N, G) = (8, 128); bf16 similarity map + bf16 hard labels (no wrapper casts).
    N1, G1 = 8, 128
    S1 = jax.random.normal(k1, (N1, G1), dtype=jnp.float32).astype(jnp.bfloat16)
    y1 = (jax.random.uniform(k2, (N1, G1)) > 0.8).astype(jnp.bfloat16)
    out1 = jax.block_until_ready(scaled_asl(S1, y1, s=s_param, b=b_param, norm_s=True))
    ref1 = _scaled_asl_ref(S1.astype(jnp.float32), y1.astype(jnp.float32),
                           s=s_param, b=b_param, norm_s=True)
    assert jnp.allclose(out1, ref1, rtol=1e-5, atol=1e-5), (out1, ref1)

    # Case 2: multi-block two-core grid with ragged last tile + clamped trailing block.
    N2, G2 = 517, 128
    S2 = jax.random.normal(k3, (N2, G2), dtype=jnp.float32)
    y2 = (jax.random.uniform(k4, (N2, G2)) > 0.8).astype(jnp.float32)
    out2 = jax.block_until_ready(
        scaled_asl(S2, y2, s=s_param, b=b_param, norm_s=True, block_rows=128))
    ref2 = _scaled_asl_ref(S2, y2, s=s_param, b=b_param, norm_s=True)
    assert jnp.allclose(out2, ref2, rtol=1e-4, atol=1e-2), (out2, ref2)

    # Case 3: even two-core split, wider G, reduced-HBM dtypes (bf16 activations + bf16 labels).
    N3, G3 = 512, 256
    S3 = jax.random.normal(k5, (N3, G3), dtype=jnp.float32).astype(jnp.bfloat16)
    y3 = (jax.random.uniform(k6, (N3, G3)) > 0.7).astype(jnp.bfloat16)
    out3 = jax.block_until_ready(
        scaled_asl(S3, y3, s=s_param, b=b_param, norm_s=True, block_rows=128))
    ref3 = _scaled_asl_ref(S3.astype(jnp.float32), y3.astype(jnp.float32),
                           s=s_param, b=b_param, norm_s=True)
    assert jnp.allclose(out3, ref3, rtol=1e-4, atol=1e-2), (out3, ref3)

    print("KERNEL_OK")
</pallas_src>

<mosaic_0001>
module attributes {stable_mosaic.version = 11 : i64} {
  func.func @_scaled_asl_kernel(%arg0: i32, %arg1: i32, %arg2: memref<2xf32, #tpu.memory_space<smem>>, %arg3: memref<8x128xbf16, #tpu.memory_space<vmem>>, %arg4: memref<8x128xbf16, #tpu.memory_space<vmem>>, %arg5: memref<1x1x1xf32, #tpu.memory_space<vmem>>) attributes {dimension_semantics = [#tpu.dimension_semantics<parallel>, #tpu.dimension_semantics<arbitrary>], iteration_bounds = array<i64: 1, 1>, scalar_prefetch = 1 : i64, scratch_operands = 0 : i64, tpu.core_type = #tpu.core_type<tc>, window_params = [{transform_indices = @transform_0, window_bounds = array<i64: 8, 128>}, {transform_indices = @transform_1, window_bounds = array<i64: 8, 128>}, {transform_indices = @transform_2, window_bounds = array<i64: 1, 1, 1>}]} {
    %c0 = arith.constant 0 : index
    %0 = memref.load %arg2[%c0] : memref<2xf32, #tpu.memory_space<smem>>
    %c1 = arith.constant 1 : index
    %1 = memref.load %arg2[%c1] : memref<2xf32, #tpu.memory_space<smem>>
    %c0_0 = arith.constant 0 : index
    %c0_1 = arith.constant 0 : index
    %2 = vector.load %arg3[%c0_0, %c0_1] : memref<8x128xbf16, #tpu.memory_space<vmem>>, vector<8x128xbf16>
    %3 = arith.extf %2 : vector<8x128xbf16> to vector<8x128xf32>
    %c0_2 = arith.constant 0 : index
    %c0_3 = arith.constant 0 : index
    %4 = vector.load %arg4[%c0_2, %c0_3] : memref<8x128xbf16, #tpu.memory_space<vmem>>, vector<8x128xbf16>
    %cst = arith.constant 0.000000e+00 : bf16
    %5 = vector.broadcast %cst : bf16 to vector<8x128xbf16>
    %6 = arith.cmpf ogt, %4, %5 : vector<8x128xbf16>
    %7 = vector.broadcast %0 : f32 to vector<8x128xf32>
    %8 = arith.mulf %7, %3 : vector<8x128xf32>
    %9 = vector.broadcast %1 : f32 to vector<8x128xf32>
    %10 = arith.addf %8, %9 : vector<8x128xf32>
    %11 = arith.negf %10 : vector<8x128xf32>
    %12 = math.exp %11 : vector<8x128xf32>
    %cst_4 = arith.constant 1.000000e+00 : f32
    %13 = vector.broadcast %cst_4 : f32 to vector<8x128xf32>
    %14 = arith.addf %13, %12 : vector<8x128xf32>
    %15 = arith.divf %13, %14 : vector<8x128xf32>
    %cst_5 = arith.constant 1.050000e+00 : f32
    %16 = vector.broadcast %cst_5 : f32 to vector<8x128xf32>
    %17 = arith.subf %16, %15 : vector<8x128xf32>
    %cst_6 = arith.constant 1.000000e+00 : f32
    %18 = vector.broadcast %cst_6 : f32 to vector<8x128xf32>
    %19 = arith.minimumf %17, %18 : vector<8x128xf32>
    %cst_7 = arith.constant 9.99999993E-9 : f32
    %20 = vector.broadcast %cst_7 : f32 to vector<8x128xf32>
    %21 = arith.maximumf %15, %20 : vector<8x128xf32>
    %22 = arith.select %6, %21, %19 : vector<8x128xi1>, vector<8x128xf32>
    %23 = math.log %22 : vector<8x128xf32>
    %cst_8 = arith.constant 1.000000e+00 : f32
    %24 = vector.broadcast %cst_8 : f32 to vector<8x128xf32>
    %25 = arith.subf %24, %22 : vector<8x128xf32>
    %26 = arith.mulf %25, %25 : vector<8x128xf32>
    %27 = arith.mulf %26, %26 : vector<8x128xf32>
    %28 = arith.select %6, %25, %27 : vector<8x128xi1>, vector<8x128xf32>
    %29 = arith.mulf %23, %28 : vector<8x128xf32>
    %c0_i32 = arith.constant 0 : i32
    %30 = arith.cmpi eq, %arg1, %c0_i32 : i32
    %31 = arith.extui %30 : i1 to i32
    %c0_i32_9 = arith.constant 0 : i32
    %32 = arith.cmpi ne, %31, %c0_i32_9 : i32
    scf.if %32 {
      %cst_18 = arith.constant 0.000000e+00 : f32
      %41 = vector.broadcast %cst_18 : f32 to vector<1x1x1xf32>
      %c0_19 = arith.constant 0 : index
      %c0_20 = arith.constant 0 : index
      %c0_21 = arith.constant 0 : index
      %42 = vector.load %arg5[%c0_19, %c0_20, %c0_21] : memref<1x1x1xf32, #tpu.memory_space<vmem>>, vector<1x1x1xf32>
      tpu.vector_store %arg5[%c0_19, %c0_20, %c0_21], %41 {strides = array<i32>} : memref<1x1x1xf32, #tpu.memory_space<vmem>>, vector<1x1x1xf32>,
    } else {
    }
    %cst_10 = arith.constant dense<0.000000e+00> : vector<8xf32>
    %33 = vector.multi_reduction <add>, %29, %cst_10 [1] : vector<8x128xf32> to vector<8xf32>
    %34 = vector.shape_cast %33 : vector<8xf32> to vector<8x1xf32>
    %cst_11 = arith.constant dense<0.000000e+00> : vector<1xf32>
    %35 = vector.multi_reduction <add>, %34, %cst_11 [0] : vector<8x1xf32> to vector<1xf32>
    %36 = vector.shape_cast %35 : vector<1xf32> to vector<1x1xf32>
    %c0_12 = arith.constant 0 : index
    %c0_13 = arith.constant 0 : index
    %c0_14 = arith.constant 0 : index
    %37 = vector.load %arg5[%c0_12, %c0_13, %c0_14] : memref<1x1x1xf32, #tpu.memory_space<vmem>>, vector<1x1x1xf32>
    %38 = vector.shape_cast %36 : vector<1x1xf32> to vector<1x1x1xf32>
    %39 = arith.addf %37, %38 : vector<1x1x1xf32>
    %c0_15 = arith.constant 0 : index
    %c0_16 = arith.constant 0 : index
    %c0_17 = arith.constant 0 : index
    %40 = vector.load %arg5[%c0_15, %c0_16, %c0_17] : memref<1x1x1xf32, #tpu.memory_space<vmem>>, vector<1x1x1xf32>
    tpu.vector_store %arg5[%c0_15, %c0_16, %c0_17], %39 {strides = array<i32>} : memref<1x1x1xf32, #tpu.memory_space<vmem>>, vector<1x1x1xf32>,
    return
  }
  func.func @transform_0(%arg0: i32, %arg1: i32, %arg2: memref<2xf32, #tpu.memory_space<smem>>) -> (i32, i32) {
    %c1_i32 = arith.constant 1 : i32
    %0 = arith.muli %arg0, %c1_i32 : i32
    %1 = arith.addi %0, %arg1 : i32
    %c0_i32 = arith.constant 0 : i32
    %c0_i32_0 = arith.constant 0 : i32
    return %1, %c0_i32 : i32, i32
  }
  func.func @transform_1(%arg0: i32, %arg1: i32, %arg2: memref<2xf32, #tpu.memory_space<smem>>) -> (i32, i32) {
    %c1_i32 = arith.constant 1 : i32
    %0 = arith.muli %arg0, %c1_i32 : i32
    %1 = arith.addi %0, %arg1 : i32
    %c0_i32 = arith.constant 0 : i32
    %c0_i32_0 = arith.constant 0 : i32
    return %1, %c0_i32 : i32, i32
  }
  func.func @transform_2(%arg0: i32, %arg1: i32, %arg2: memref<2xf32, #tpu.memory_space<smem>>) -> (i32, i32, i32) {
    %c0_i32 = arith.constant 0 : i32
    %c0_i32_0 = arith.constant 0 : i32
    %c0_i32_1 = arith.constant 0 : i32
    return %arg0, %c0_i32, %c0_i32_0 : i32, i32, i32
  }
}

</mosaic_0001>

<llo_original>
// kernel: tpu_custom_call.1
$region0: #{tpu_custom_call.1}
  #allocation0 [shape = 'u32[]', space=smem, size = 0x4, offset = 0x4, fixed_abs, tag = 'smem constant byte address 0x4 - core index']
  #allocation1 [shape = 'u32[72,128]{1,0:T(1,128)}', space=vmem, size = 0x9000, scoped, tag = 'internal scratch']
  #allocation2 [shape = 's32[1]{0}', space=sflag, size = 0x4, scoped, tag = 'scoped memory for tpu_custom_call.1']
  #allocation3 [shape = 'u8[512]{0}', space=smem, size = 0x200, scoped, tag = 'prefetched SMEM operand 0']
  %s0 = inlined_call_operand.hbm [shape: f32[2], index: 0, kind: input, shape index: {}]
  %s1 = inlined_call_operand.hbm [shape: bf16[8,128], index: 1, kind: input, shape index: {}]
  %s2 = inlined_call_operand.hbm [shape: bf16[8,128], index: 2, kind: input, shape index: {}]
  %s3 = inlined_call_operand.hbm [shape: f32[1,1,1], index: 3, kind: output, shape index: {}]
  %s4 = sld [smem:[#allocation0]]
  $region30: #{tpu_custom_call.1} parent=0
    _
  %s6 = ssub.s32 1, %s4
  %s7 = scalar_select 0, %s6, %s4
  %s9 = sshll.u32 %s0, 4
  %s10 = int_to_ptr.hbm [resolvable:$true] %s9
  %12 = dma.hbm_to_smem %s10, 16, [#allocation3], [#allocation2]
  %14 = dma.done [#allocation2], 16
  %15 = sfence
  $region1: #{tpu_custom_call.1} parent=0
    #allocation4 [shape = 'u8[2048]{0}', space=vmem, size = 0x800, scoped, tag = 'input window, operand 1, single buffered']
    #allocation5 [shape = 's32[1]{0}', space=sflag, size = 0x4, scoped, tag = 'scoped memory for tpu_custom_call.1']
    #allocation6 [shape = 's32[1]{0}', space=sflag, size = 0x4, scoped, tag = 'scoped memory for tpu_custom_call.1']
    #allocation7 [shape = 'u8[2048]{0}', space=vmem, size = 0x800, scoped, tag = 'input window, operand 2, single buffered']
    #allocation8 [shape = 's32[1]{0}', space=sflag, size = 0x4, scoped, tag = 'scoped memory for tpu_custom_call.1']
    #allocation9 [shape = 'u8[512]{0}', space=vmem, size = 0x400, scoped, tag = 'output window, operand 0, single buffered']
    %16 = vsyncpa [#allocation5], 0
    %17 = vsyncpa [#allocation8], 0
    %18 = vsyncpa [#allocation6], 0
    // Predicated region
    $region2: #{tpu_custom_call.1} parent=1 // pred_check
      _
    $region3: #{tpu_custom_call.1} parent=1 // pred_check_branch
      %20 = sbr.rel (0) target = $region5
    $region4: #{tpu_custom_call.1} parent=1 // pred_region
      %s21 = sadd.s32 0, 0
      %23 = vsyncadd [#allocation5], 0
      %s24 = smul.addr %s21, 4
      %s25 = scalar_lea.hbm %s1, %s24
      %s27 = sshll.u32 %s25, 4
      %s28 = int_to_ptr.hbm [resolvable:$true] %s27
      %s29 = sshll.u32 [#allocation4], 4
      %s30 = int_to_ptr.vmem [resolvable:$true] %s29
      %32 = dma.hbm_to_vmem [thread:$0]  %s28, 64, %s30, [#allocation5]
    $region5: #{tpu_custom_call.1} parent=1 // pred_fallthru
      _
    // Predicated region
    $region6: #{tpu_custom_call.1} parent=1 // pred_check
      _
    $region7: #{tpu_custom_call.1} parent=1 // pred_check_branch
      %34 = sbr.rel (0) target = $region9
    $region8: #{tpu_custom_call.1} parent=1 // pred_region
      %s35 = sadd.s32 0, 0
      %37 = vsyncadd [#allocation8], 0
      %s38 = smul.addr %s35, 4
      %s39 = scalar_lea.hbm %s2, %s38
      %s41 = sshll.u32 %s39, 4
      %s42 = int_to_ptr.hbm [resolvable:$true] %s41
      %s43 = sshll.u32 [#allocation7], 4
      %s44 = int_to_ptr.vmem [resolvable:$true] %s43
      %46 = dma.hbm_to_vmem [thread:$0]  %s42, 64, %s44, [#allocation8]
    $region9: #{tpu_custom_call.1} parent=1 // pred_fallthru
      _
    // Predicated region
    $region10: #{tpu_custom_call.1} parent=1 // pred_check
      _
    $region11: #{tpu_custom_call.1} parent=1 // pred_check_branch
      %48 = sbr.rel (0) target = $region13
    $region12: #{tpu_custom_call.1} parent=1 // pred_region
      %50 = dma.done [#allocation5], 64
    $region13: #{tpu_custom_call.1} parent=1 // pred_fallthru
      _
    // Predicated region
    $region14: #{tpu_custom_call.1} parent=1 // pred_check
      _
    $region15: #{tpu_custom_call.1} parent=1 // pred_check_branch
      %52 = sbr.rel (0) target = $region17
    $region16: #{tpu_custom_call.1} parent=1 // pred_region
      %54 = dma.done [#allocation8], 64
    $region17: #{tpu_custom_call.1} parent=1 // pred_fallthru
      _
    %s55 = sadd.s32 0, 0
    %s56 = sadd.s32 0, 0
    %s57 = sld [smem:[#allocation3]]
    %s58 = sld [smem:[#allocation3 + $0x1]]
    %v59 = vld [vmem:[#allocation4] sm:$0xf]
    %v60 = vunpack.c.l.bf16 %v59
    %v61 = vld [vmem:[#allocation7] sm:$0xf]
    %v62 = vunpack.c.l.bf16 %v61
    %vm63 = vcmp.gt.f32.partialorder %v62, 0.0
    %v64 = vstv %s57
    %v65 = vmul.f32 %v64, %v60
    %v66 = vstv %s58
    %v67 = vadd.f32 %v65, %v66
    %v68 = vxor.u32 %v67, 2147483648
    %v69 = vmul.f32 %v68, 1.442695
    %v70 = vpow.pop %v69
    %v71 = vadd.f32 %v70, 1.0
    %v72 = vrcp.pop %v71
    %v73 = vmul.f32 %v71, %v72
    %v74 = vsub.f32 1.0, %v73
    %v75 = vmul.f32 %v72, %v74
    %v76 = vadd.f32 %v72, %v75
    %vm77 = vweird.f32 %v71
    %vm78 = vweird.f32 %v72
    %vm79 = vmor %vm77, %vm78
    %v80 = vsel %vm79, %v72, %v76
    %v81 = vand.u32 2147483647, %v71
    %vm82 = vcmp.eq.f32.partialorder %v81, 8.507059e+37
    %v83 = vand.u32 %v71, 2147483648
    %v84 = vor.u32 1.1754944e-38, %v83
    %v85 = vsel %vm82, %v84, %v80
    %v86 = vmul.f32 1.0, %v85
    %v87 = vsub.f32 1.05, %v86
    %v88 = vmin.f32 %v87, 1.0
    %v89 = vmax.f32 %v86, 1e-08
    %v90 = vsel %vm63, %v89, %v88
    %v91 = vlog2.pop %v90
    %v92 = vmul.f32 %v91, 0.6931472
    %v93 = vsub.f32 1.0, %v90
    %v94 = vmul.f32 %v93, %v93
    %v95 = vmul.f32 %v94, %v94
    %v96 = vsel %vm63, %v93, %v95
    %v97 = vmul.f32 %v92, %v96
    %p98 = scmp.eq.s32.totalorder 0, 0
    // Predicated region
    $region18: #{tpu_custom_call.1} parent=1 // pred_check
      %p99 = pneg %p98
    $region19: #{tpu_custom_call.1} parent=1 // pred_check_branch
      %101 = sbr.rel (%p99) target = $region21
    $region20: #{tpu_custom_call.1} parent=1 // pred_region
      %vm102 = vcmask 0
      %103 = vst.msk [vmem:[#allocation9] sm:$0x1] %vm102, 0.0
    $region21: #{tpu_custom_call.1} parent=1 // pred_fallthru
      _
    %104 = vadd.xlane.f32.xlu0 %v97
    %v105 = vpop.xlane.xlu0 %104
    %v106 = vrot.slane %v105, 4
    %v107 = vadd.f32 %v105, %v106
    %v108 = vrot.slane %v107, 2
    %v109 = vadd.f32 %v107, %v108
    %v110 = vrot.slane %v109, 1
    %v111 = vadd.f32 %v109, %v110
    %v112 = vld [vmem:[#allocation9] sm:$0x1]
    %v113 = vadd.f32 %v112, %v111
    %vm114 = vcmask 0
    %115 = vst.msk [vmem:[#allocation9] sm:$0x1] %vm114, %v113
    // Predicated region
    $region22: #{tpu_custom_call.1} parent=1 // pred_check
      _
    $region23: #{tpu_custom_call.1} parent=1 // pred_check_branch
      %117 = sbr.rel (0) target = $region25
    $region24: #{tpu_custom_call.1} parent=1 // pred_region
      %119 = vsyncadd [#allocation6], 0
      %s121 = sshll.u32 [#allocation9], 4
      %s122 = int_to_ptr.vmem [resolvable:$true] %s121
      %s123 = sshll.u32 %s3, 4
      %s124 = int_to_ptr.hbm [resolvable:$true] %s123
      %126 = dma.vmem_to_hbm [thread:$0]  %s122, 16, %s124, [#allocation6]
    $region25: #{tpu_custom_call.1} parent=1 // pred_fallthru
      _
    // Predicated region
    $region26: #{tpu_custom_call.1} parent=1 // pred_check
      _
    $region27: #{tpu_custom_call.1} parent=1 // pred_check_branch
      %128 = sbr.rel (0) target = $region29
    $region28: #{tpu_custom_call.1} parent=1 // pred_region
      %130 = dma.done [#allocation6], 16
    $region29: #{tpu_custom_call.1} parent=1 // pred_fallthru
      _
    %131 = vsyncpa [#allocation5], 1
    %132 = vsyncpa [#allocation8], 1
    %133 = vsyncpa [#allocation6], 1

</llo_original>
